<compile_context>
chip_gen: v7x
topology: tpu7x:2x2x1
jax: 0.10.0
libtpu: 0.0.40
codegen_flags: <defaults>
</compile_context>

<pallas_src>
import functools

import jax
import jax.numpy as jnp
from jax import lax
from jax.experimental import pallas as pl
from jax.experimental.pallas import tpu as pltpu


def _dtkd_kernel(s_ref, t_ref, out_ref, *, temperature, hw, tile_hw):
    """DTKD partial sums for one (C, tile_hw) block of pixels."""
    s = s_ref[0].astype(jnp.float32)          # (C, tile_hw) student logits
    t = t_ref[0].astype(jnp.float32)          # (C, tile_hw) teacher logits (resized)
    T = jnp.float32(temperature)
    inv_T = jnp.float32(1.0 / temperature)

    needs_mask = (hw % tile_hw) != 0          # static Python bool
    if needs_mask:
        pix = pl.program_id(1) * tile_hw + lax.broadcasted_iota(
            jnp.int32, (1, tile_hw), 1)
        valid = pix < hw
        # Padded pixels get constant logits: every term stays finite and the
        # resulting KL is exactly zero; they are also masked from the sums.
        s = jnp.where(valid, s, 1.0)
        t = jnp.where(valid, t, 1.0)

    # Per-pixel channel maxima (sublane reductions) -> shape (1, tile_hw).
    s_max = jnp.max(s, axis=0, keepdims=True)
    t_max = jnp.max(t, axis=0, keepdims=True)

    # Dual temperatures.  NOTE: parity with the PyTorch module -- no guard for
    # s_max + t_max <= 0 (the reference would NaN/flip there as well).
    inv_denom = 1.0 / (s_max + t_max)
    s_temp = (2.0 * T) * s_max * inv_denom
    t_temp = (2.0 * T) * t_max * inv_denom
    inv_s_temp = 1.0 / s_temp
    inv_t_temp = 1.0 / t_temp

    def kl_row(zs, zt, ms, mt):
        # zs/zt: scaled logits (C, tile_hw); ms/mt: per-pixel shifts (1, tile_hw).
        # One exp pass per distribution; the softmax reuses the exponentials.
        es = jnp.exp(zs - ms)
        et = jnp.exp(zt - mt)
        sum_s = jnp.sum(es, axis=0, keepdims=True)
        sum_t = jnp.sum(et, axis=0, keepdims=True)
        log_p = (zs - ms) - jnp.log(sum_s)                  # student log-softmax
        log_q = (zt - mt) - jnp.log(sum_t)                  # teacher log-softmax
        q = et * (1.0 / sum_t)                              # teacher softmax
        return jnp.sum(q * (log_q - log_p), axis=0, keepdims=True)

    # "ours" dual-temperature term, weighted by t_temp * s_temp.
    ours_w = kl_row(s * inv_s_temp, t * inv_t_temp,
                    s_max * inv_s_temp, t_max * inv_t_temp) * (t_temp * s_temp)
    # Vanilla KD term, weighted by T^2.
    kd_w = kl_row(s * inv_T, t * inv_T,
                  s_max * inv_T, t_max * inv_T) * (T * T)

    if needs_mask:
        validf = valid.astype(jnp.float32)
        ours_w = ours_w * validf
        kd_w = kd_w * validf

    ours_sum = jnp.sum(ours_w)
    kd_sum = jnp.sum(kd_w)

    # Pack both per-tile partial sums into one aligned (8, 256) output block:
    # ours at [0, 0], kd at [0, 128], zeros elsewhere.
    lane = lax.broadcasted_iota(jnp.int32, (8, 256), 1)
    sub = lax.broadcasted_iota(jnp.int32, (8, 256), 0)
    out_ref[0, 0] = jnp.where((sub == 0) & (lane == 0), ours_sum,
                              jnp.where((sub == 0) & (lane == 128), kd_sum, 0.0))


def _interp_matrix(out_size, in_size):
    """1-D bilinear interpolation matrix matching F.interpolate(align_corners=True)."""
    if in_size == 1:
        return jnp.ones((out_size, 1), jnp.float32)
    if out_size == 1:
        src = jnp.zeros((1,), jnp.float32)
    else:
        src = jnp.arange(out_size, dtype=jnp.float32) * (
            (in_size - 1) / (out_size - 1))
    lo = jnp.clip(jnp.floor(src).astype(jnp.int32), 0, in_size - 1)
    hi = jnp.minimum(lo + 1, in_size - 1)
    w = src - lo.astype(jnp.float32)
    rows = jnp.arange(out_size)
    m = jnp.zeros((out_size, in_size), jnp.float32)
    m = m.at[rows, lo].add(1.0 - w)
    m = m.at[rows, hi].add(w)
    return m


def bilinear_align_corners(x, out_h, out_w):
    """NCHW bilinear resize with align_corners=True via static interp matrices."""
    _, _, h, w = x.shape
    mh = _interp_matrix(out_h, h)
    mw = _interp_matrix(out_w, w)
    return jnp.einsum('bchw,Hh,Ww->bcHW', x.astype(jnp.float32), mh, mw)


def dtkd_loss(logits_s, logits_t, iteration, *, alpha=3.0, beta=1.0,
              temperature=4.0, warmup=20, max_tile_hw=16384):
    B, C, H, W = logits_s.shape
    HW = H * W

    # TODO(synk): the bilinear teacher resize could be fused into the kernel as
    # a tiny static-matrix MXU matmul per tile to avoid materializing the
    # full-resolution teacher tensor in HBM.
    t_resized = bilinear_align_corners(logits_t, H, W)

    # NCHW -> (B, C, H*W): pixels on lanes, channels on sublanes (free reshape).
    s3d = logits_s.astype(jnp.float32).reshape(B, C, HW)
    t3d = t_resized.reshape(B, C, HW)

    assert max_tile_hw % 128 == 0
    tile_hw = HW if HW <= max_tile_hw else max_tile_hw
    n_tiles = (HW + tile_hw - 1) // tile_hw       # ragged tail masked in-kernel

    kernel = functools.partial(_dtkd_kernel, temperature=float(temperature),
                               hw=HW, tile_hw=tile_hw)
    partials = pl.pallas_call(
        kernel,
        out_shape=jax.ShapeDtypeStruct((B, n_tiles, 8, 256), jnp.float32),
        grid=(B, n_tiles),
        in_specs=[pl.BlockSpec((1, C, tile_hw), lambda b, i: (b, 0, i)),
                  pl.BlockSpec((1, C, tile_hw), lambda b, i: (b, 0, i))],
        out_specs=pl.BlockSpec((1, 1, 8, 256), lambda b, i: (b, i, 0, 0)),
        compiler_params=pltpu.CompilerParams(
            dimension_semantics=("parallel", "parallel"),
            vmem_limit_bytes=32 * 1024 * 1024),
    )(s3d, t3d)

    n_pix = B * HW
    loss_ourskd = jnp.sum(partials[:, :, 0, 0]) / n_pix
    loss_kd = jnp.sum(partials[:, :, 0, 128]) / n_pix
    scale = min(float(iteration) / warmup, 1.0)
    return scale * (alpha * loss_ourskd + beta * loss_kd) * 0.01


def _reference(logits_s, logits_t, iteration, *, alpha=3.0, beta=1.0,
               temperature=4.0, warmup=20):
    """Pure-JAX reference mirroring the PyTorch forward."""
    B, C, H, W = logits_s.shape
    t = bilinear_align_corners(logits_t, H, W)
    s = logits_s.astype(jnp.float32)
    T = temperature
    s_max = jnp.max(s, axis=1, keepdims=True)
    t_max = jnp.max(t, axis=1, keepdims=True)
    s_temp = 2 * s_max / (t_max + s_max) * T
    t_temp = 2 * t_max / (t_max + s_max) * T
    log_p = jax.nn.log_softmax(s / s_temp, axis=1)
    q = jax.nn.softmax(t / t_temp, axis=1)
    ours = jnp.sum(q * (jnp.log(q) - log_p), axis=1, keepdims=True)
    loss_ourskd = jnp.mean(ours * t_temp * s_temp)
    log_pv = jax.nn.log_softmax(s / T, axis=1)
    qv = jax.nn.softmax(t / T, axis=1)
    kd = jnp.sum(qv * (jnp.log(qv) - log_pv), axis=1, keepdims=True)
    loss_kd = jnp.mean(kd * (T * T))
    return min(float(iteration) / warmup, 1.0) * (alpha * loss_ourskd + beta * loss_kd) * 0.01


if __name__ == "__main__":
    key = jax.random.PRNGKey(0)
    k1, k2, k3, k4, k5, k6 = jax.random.split(key, 6)

    # Test 1: small shapes consistent with the module (19 classes, seg logits).
    B, C, H, W = 2, 19, 16, 16
    Ht, Wt = 8, 8
    logits_s = jax.random.normal(k1, (B, C, H, W), jnp.float32)
    logits_t = jax.random.normal(k2, (B, C, Ht, Wt), jnp.float32)
    iteration = 10

    # nn.Linear(19, 19) is declared in __init__ but never used in forward;
    # initialized deterministically for parity only.
    bound = 1.0 / (19 ** 0.5)
    fc_w = jax.random.uniform(k3, (19, 19), jnp.float32, -bound, bound)
    fc_b = jax.random.uniform(k4, (19,), jnp.float32, -bound, bound)

    loss = jax.block_until_ready(dtkd_loss(logits_s, logits_t, iteration))
    ref = _reference(logits_s, logits_t, iteration)
    assert jnp.isfinite(loss), "loss is not finite"
    assert jnp.allclose(loss, ref, rtol=2e-4, atol=1e-6), (loss, ref)

    # Test 2: non-square spatial with a tile that does not divide H*W, forcing
    # the multi-tile grid + ragged-tail masking path (320 pixels, tile 128).
    H2, W2 = 16, 20
    logits_s2 = jax.random.normal(k5, (B, C, H2, W2), jnp.float32)
    logits_t2 = jax.random.normal(k6, (B, C, 10, 12), jnp.float32)
    iteration2 = 30  # > warmup, exercises the min() clamp
    loss2 = jax.block_until_ready(
        dtkd_loss(logits_s2, logits_t2, iteration2, max_tile_hw=128))
    ref2 = _reference(logits_s2, logits_t2, iteration2)
    assert jnp.isfinite(loss2), "loss2 is not finite"
    assert jnp.allclose(loss2, ref2, rtol=2e-4, atol=1e-6), (loss2, ref2)

    print("KERNEL_OK")
</pallas_src>

<mosaic_0001>
module attributes {stable_mosaic.version = 11 : i64} {
  func.func @_dtkd_kernel(%arg0: i32, %arg1: i32, %arg2: memref<1x19x256xf32, #tpu.memory_space<vmem>>, %arg3: memref<1x19x256xf32, #tpu.memory_space<vmem>>, %arg4: memref<1x1x8x256xf32, #tpu.memory_space<vmem>>) attributes {dimension_semantics = [#tpu.dimension_semantics<parallel>, #tpu.dimension_semantics<parallel>], iteration_bounds = array<i64: 2, 1>, scalar_prefetch = 0 : i64, scratch_operands = 0 : i64, tpu.core_type = #tpu.core_type<tc>, window_params = [{transform_indices = @transform_0, window_bounds = array<i64: 1, 19, 256>}, {transform_indices = @transform_1, window_bounds = array<i64: 1, 19, 256>}, {transform_indices = @transform_2, window_bounds = array<i64: 1, 1, 8, 256>}]} {
    %c0 = arith.constant 0 : index
    %c0_0 = arith.constant 0 : index
    %c0_1 = arith.constant 0 : index
    %0 = vector.load %arg2[%c0, %c0_0, %c0_1] : memref<1x19x256xf32, #tpu.memory_space<vmem>>, vector<1x19x256xf32>
    %1 = vector.shape_cast %0 : vector<1x19x256xf32> to vector<19x256xf32>
    %c0_2 = arith.constant 0 : index
    %c0_3 = arith.constant 0 : index
    %c0_4 = arith.constant 0 : index
    %2 = vector.load %arg3[%c0_2, %c0_3, %c0_4] : memref<1x19x256xf32, #tpu.memory_space<vmem>>, vector<1x19x256xf32>
    %3 = vector.shape_cast %2 : vector<1x19x256xf32> to vector<19x256xf32>
    %cst = arith.constant dense<0xFF800000> : vector<256xf32>
    %4 = vector.multi_reduction <maximumf>, %1, %cst [0] : vector<19x256xf32> to vector<256xf32>
    %5 = vector.shape_cast %4 : vector<256xf32> to vector<1x256xf32>
    %cst_5 = arith.constant dense<0xFF800000> : vector<256xf32>
    %6 = vector.multi_reduction <maximumf>, %3, %cst_5 [0] : vector<19x256xf32> to vector<256xf32>
    %7 = vector.shape_cast %6 : vector<256xf32> to vector<1x256xf32>
    %8 = arith.addf %5, %7 : vector<1x256xf32>
    %cst_6 = arith.constant 1.000000e+00 : f32
    %9 = vector.broadcast %cst_6 : f32 to vector<1x256xf32>
    %10 = arith.divf %9, %8 : vector<1x256xf32>
    %cst_7 = arith.constant 2.000000e+00 : f32
    %cst_8 = arith.constant 4.000000e+00 : f32
    %11 = arith.mulf %cst_7, %cst_8 : f32
    %12 = vector.broadcast %11 : f32 to vector<1x256xf32>
    %13 = arith.mulf %12, %5 : vector<1x256xf32>
    %14 = arith.mulf %13, %10 : vector<1x256xf32>
    %cst_9 = arith.constant 2.000000e+00 : f32
    %cst_10 = arith.constant 4.000000e+00 : f32
    %15 = arith.mulf %cst_9, %cst_10 : f32
    %16 = vector.broadcast %15 : f32 to vector<1x256xf32>
    %17 = arith.mulf %16, %7 : vector<1x256xf32>
    %18 = arith.mulf %17, %10 : vector<1x256xf32>
    %cst_11 = arith.constant 1.000000e+00 : f32
    %19 = vector.broadcast %cst_11 : f32 to vector<1x256xf32>
    %20 = arith.divf %19, %14 : vector<1x256xf32>
    %cst_12 = arith.constant 1.000000e+00 : f32
    %21 = vector.broadcast %cst_12 : f32 to vector<1x256xf32>
    %22 = arith.divf %21, %18 : vector<1x256xf32>
    %23 = vector.broadcast %20 : vector<1x256xf32> to vector<19x256xf32>
    %24 = arith.mulf %1, %23 : vector<19x256xf32>
    %25 = vector.broadcast %22 : vector<1x256xf32> to vector<19x256xf32>
    %26 = arith.mulf %3, %25 : vector<19x256xf32>
    %27 = arith.mulf %5, %20 : vector<1x256xf32>
    %28 = arith.mulf %7, %22 : vector<1x256xf32>
    %29 = vector.broadcast %27 : vector<1x256xf32> to vector<19x256xf32>
    %30 = arith.subf %24, %29 : vector<19x256xf32>
    %31 = math.exp %30 : vector<19x256xf32>
    %32 = vector.broadcast %28 : vector<1x256xf32> to vector<19x256xf32>
    %33 = arith.subf %26, %32 : vector<19x256xf32>
    %34 = math.exp %33 : vector<19x256xf32>
    %cst_13 = arith.constant dense<0.000000e+00> : vector<256xf32>
    %35 = vector.multi_reduction <add>, %31, %cst_13 [0] : vector<19x256xf32> to vector<256xf32>
    %36 = vector.shape_cast %35 : vector<256xf32> to vector<1x256xf32>
    %cst_14 = arith.constant dense<0.000000e+00> : vector<256xf32>
    %37 = vector.multi_reduction <add>, %34, %cst_14 [0] : vector<19x256xf32> to vector<256xf32>
    %38 = vector.shape_cast %37 : vector<256xf32> to vector<1x256xf32>
    %39 = vector.broadcast %27 : vector<1x256xf32> to vector<19x256xf32>
    %40 = arith.subf %24, %39 : vector<19x256xf32>
    %41 = math.log %36 : vector<1x256xf32>
    %42 = vector.broadcast %41 : vector<1x256xf32> to vector<19x256xf32>
    %43 = arith.subf %40, %42 : vector<19x256xf32>
    %44 = vector.broadcast %28 : vector<1x256xf32> to vector<19x256xf32>
    %45 = arith.subf %26, %44 : vector<19x256xf32>
    %46 = math.log %38 : vector<1x256xf32>
    %47 = vector.broadcast %46 : vector<1x256xf32> to vector<19x256xf32>
    %48 = arith.subf %45, %47 : vector<19x256xf32>
    %cst_15 = arith.constant 1.000000e+00 : f32
    %49 = vector.broadcast %cst_15 : f32 to vector<1x256xf32>
    %50 = arith.divf %49, %38 : vector<1x256xf32>
    %51 = vector.broadcast %50 : vector<1x256xf32> to vector<19x256xf32>
    %52 = arith.mulf %34, %51 : vector<19x256xf32>
    %53 = arith.subf %48, %43 : vector<19x256xf32>
    %54 = arith.mulf %52, %53 : vector<19x256xf32>
    %cst_16 = arith.constant dense<0.000000e+00> : vector<256xf32>
    %55 = vector.multi_reduction <add>, %54, %cst_16 [0] : vector<19x256xf32> to vector<256xf32>
    %56 = vector.shape_cast %55 : vector<256xf32> to vector<1x256xf32>
    %57 = arith.mulf %18, %14 : vector<1x256xf32>
    %58 = arith.mulf %56, %57 : vector<1x256xf32>
    %cst_17 = arith.constant 2.500000e-01 : f32
    %59 = vector.broadcast %cst_17 : f32 to vector<19x256xf32>
    %60 = arith.mulf %1, %59 : vector<19x256xf32>
    %cst_18 = arith.constant 2.500000e-01 : f32
    %61 = vector.broadcast %cst_18 : f32 to vector<19x256xf32>
    %62 = arith.mulf %3, %61 : vector<19x256xf32>
    %cst_19 = arith.constant 2.500000e-01 : f32
    %63 = vector.broadcast %cst_19 : f32 to vector<1x256xf32>
    %64 = arith.mulf %5, %63 : vector<1x256xf32>
    %cst_20 = arith.constant 2.500000e-01 : f32
    %65 = vector.broadcast %cst_20 : f32 to vector<1x256xf32>
    %66 = arith.mulf %7, %65 : vector<1x256xf32>
    %67 = vector.broadcast %64 : vector<1x256xf32> to vector<19x256xf32>
    %68 = arith.subf %60, %67 : vector<19x256xf32>
    %69 = math.exp %68 : vector<19x256xf32>
    %70 = vector.broadcast %66 : vector<1x256xf32> to vector<19x256xf32>
    %71 = arith.subf %62, %70 : vector<19x256xf32>
    %72 = math.exp %71 : vector<19x256xf32>
    %cst_21 = arith.constant dense<0.000000e+00> : vector<256xf32>
    %73 = vector.multi_reduction <add>, %69, %cst_21 [0] : vector<19x256xf32> to vector<256xf32>
    %74 = vector.shape_cast %73 : vector<256xf32> to vector<1x256xf32>
    %cst_22 = arith.constant dense<0.000000e+00> : vector<256xf32>
    %75 = vector.multi_reduction <add>, %72, %cst_22 [0] : vector<19x256xf32> to vector<256xf32>
    %76 = vector.shape_cast %75 : vector<256xf32> to vector<1x256xf32>
    %77 = vector.broadcast %64 : vector<1x256xf32> to vector<19x256xf32>
    %78 = arith.subf %60, %77 : vector<19x256xf32>
    %79 = math.log %74 : vector<1x256xf32>
    %80 = vector.broadcast %79 : vector<1x256xf32> to vector<19x256xf32>
    %81 = arith.subf %78, %80 : vector<19x256xf32>
    %82 = vector.broadcast %66 : vector<1x256xf32> to vector<19x256xf32>
    %83 = arith.subf %62, %82 : vector<19x256xf32>
    %84 = math.log %76 : vector<1x256xf32>
    %85 = vector.broadcast %84 : vector<1x256xf32> to vector<19x256xf32>
    %86 = arith.subf %83, %85 : vector<19x256xf32>
    %cst_23 = arith.constant 1.000000e+00 : f32
    %87 = vector.broadcast %cst_23 : f32 to vector<1x256xf32>
    %88 = arith.divf %87, %76 : vector<1x256xf32>
    %89 = vector.broadcast %88 : vector<1x256xf32> to vector<19x256xf32>
    %90 = arith.mulf %72, %89 : vector<19x256xf32>
    %91 = arith.subf %86, %81 : vector<19x256xf32>
    %92 = arith.mulf %90, %91 : vector<19x256xf32>
    %cst_24 = arith.constant dense<0.000000e+00> : vector<256xf32>
    %93 = vector.multi_reduction <add>, %92, %cst_24 [0] : vector<19x256xf32> to vector<256xf32>
    %94 = vector.shape_cast %93 : vector<256xf32> to vector<1x256xf32>
    %cst_25 = arith.constant 4.000000e+00 : f32
    %cst_26 = arith.constant 4.000000e+00 : f32
    %95 = arith.mulf %cst_25, %cst_26 : f32
    %96 = vector.broadcast %95 : f32 to vector<1x256xf32>
    %97 = arith.mulf %94, %96 : vector<1x256xf32>
    %98 = vector.shape_cast %58 : vector<1x256xf32> to vector<1x1x256xf32>
    %cst_27 = arith.constant dense<0.000000e+00> : vector<1xf32>
    %99 = vector.multi_reduction <add>, %98, %cst_27 [1, 2] : vector<1x1x256xf32> to vector<1xf32>
    %100 = vector.shape_cast %99 : vector<1xf32> to vector<1x1x1xf32>
    %101 = vector.extract %100[0, 0, 0] : f32 from vector<1x1x1xf32>
    %102 = vector.shape_cast %97 : vector<1x256xf32> to vector<1x1x256xf32>
    %cst_28 = arith.constant dense<0.000000e+00> : vector<1xf32>
    %103 = vector.multi_reduction <add>, %102, %cst_28 [1, 2] : vector<1x1x256xf32> to vector<1xf32>
    %104 = vector.shape_cast %103 : vector<1xf32> to vector<1x1x1xf32>
    %105 = vector.extract %104[0, 0, 0] : f32 from vector<1x1x1xf32>
    %106 = tpu.iota {dimensions = array<i32: 1>} : vector<8x256xi32>
    %107 = tpu.iota {dimensions = array<i32: 0>} : vector<8x256xi32>
    %c0_i32 = arith.constant 0 : i32
    %108 = vector.broadcast %c0_i32 : i32 to vector<8x256xi32>
    %109 = arith.cmpi eq, %107, %108 : vector<8x256xi32>
    %c0_i32_29 = arith.constant 0 : i32
    %110 = vector.broadcast %c0_i32_29 : i32 to vector<8x256xi32>
    %111 = arith.cmpi eq, %106, %110 : vector<8x256xi32>
    %112 = arith.andi %109, %111 : vector<8x256xi1>
    %c0_i32_30 = arith.constant 0 : i32
    %113 = vector.broadcast %c0_i32_30 : i32 to vector<8x256xi32>
    %114 = arith.cmpi eq, %107, %113 : vector<8x256xi32>
    %c128_i32 = arith.constant 128 : i32
    %115 = vector.broadcast %c128_i32 : i32 to vector<8x256xi32>
    %116 = arith.cmpi eq, %106, %115 : vector<8x256xi32>
    %117 = arith.andi %114, %116 : vector<8x256xi1>
    %cst_31 = arith.constant 0.000000e+00 : f32
    %118 = vector.broadcast %105 : f32 to vector<8x256xf32>
    %119 = vector.broadcast %cst_31 : f32 to vector<8x256xf32>
    %120 = arith.select %117, %118, %119 : vector<8x256xi1>, vector<8x256xf32>
    %121 = vector.broadcast %101 : f32 to vector<8x256xf32>
    %122 = arith.select %112, %121, %120 : vector<8x256xi1>, vector<8x256xf32>
    %c0_32 = arith.constant 0 : index
    %c0_33 = arith.constant 0 : index
    %c0_34 = arith.constant 0 : index
    %c0_35 = arith.constant 0 : index
    %123 = vector.load %arg4[%c0_32, %c0_33, %c0_34, %c0_35] : memref<1x1x8x256xf32, #tpu.memory_space<vmem>>, vector<1x1x8x256xf32>
    %124 = vector.shape_cast %123 : vector<1x1x8x256xf32> to vector<8x256xf32>
    %125 = vector.shape_cast %122 : vector<8x256xf32> to vector<1x1x8x256xf32>
    tpu.vector_store %arg4[%c0_32, %c0_33, %c0_34, %c0_35], %125 {strides = array<i32>} : memref<1x1x8x256xf32, #tpu.memory_space<vmem>>, vector<1x1x8x256xf32>,
    return
  }
  func.func @transform_0(%arg0: i32, %arg1: i32) -> (i32, i32, i32) {
    %c0_i32 = arith.constant 0 : i32
    %c0_i32_0 = arith.constant 0 : i32
    return %arg0, %c0_i32, %arg1 : i32, i32, i32
  }
  func.func @transform_1(%arg0: i32, %arg1: i32) -> (i32, i32, i32) {
    %c0_i32 = arith.constant 0 : i32
    %c0_i32_0 = arith.constant 0 : i32
    return %arg0, %c0_i32, %arg1 : i32, i32, i32
  }
  func.func @transform_2(%arg0: i32, %arg1: i32) -> (i32, i32, i32, i32) {
    %c0_i32 = arith.constant 0 : i32
    %c0_i32_0 = arith.constant 0 : i32
    %c0_i32_1 = arith.constant 0 : i32
    return %arg0, %arg1, %c0_i32, %c0_i32_0 : i32, i32, i32, i32
  }
}

</mosaic_0001>

<llo_original>
// kernel: tpu_custom_call.1
$region0: #{tpu_custom_call.1}
  #allocation0 [shape = 'u32[]', space=smem, size = 0x4, offset = 0x4, fixed_abs, tag = 'smem constant byte address 0x4 - core index']
  #allocation1 [shape = 'u32[144,128]{1,0:T(1,128)}', space=vmem, size = 0x12000, scoped, tag = 'internal scratch']
  %s0 = inlined_call_operand.vmem [shape: f32[2,19,256], index: 0, kind: input, shape index: {}]
  %s1 = inlined_call_operand.vmem [shape: f32[2,19,256], index: 1, kind: input, shape index: {}]
  %s2 = inlined_call_operand.hbm [shape: f32[2,1,8,256], index: 2, kind: output, shape index: {}]
  %s3 = sld [smem:[#allocation0]]
  $region41: #{tpu_custom_call.1} parent=0
    _
  %s5 = ssub.s32 1, %s3
  %s6 = scalar_select 0, %s5, %s3
  $region1: #{tpu_custom_call.1} parent=0
    #allocation2 [shape = 'u8[16384]{0}', space=vmem, size = 0x4000, scoped, tag = 'output window, operand 0']
    #allocation3 [shape = 's32[2]{0}', space=sflag, size = 0x8, scoped, tag = 'scoped memory for tpu_custom_call.1']
    %7 = vsyncpa [#allocation3], 0
    %s8 = scalar_lea.sflag [#allocation3], 1
    %9 = vsyncpa %s8, 0
    loop: start=0, step=1, limit=4
    $region2: #{tpu_custom_call.1} parent=1 // loop_pre_header
      _
    $region3: #{tpu_custom_call.1} parent=1 // loop_header
      %s11 = sphi 0, %s15
      %p12 = scmp.ge.s32.totalorder %s11, 4
      %s18 = sphi 0, %s30
      %s19 = sphi 0, %s26
      %s20 = sphi 0, %s18
      %s21 = sphi 0, %s19
      %s22 = sphi 0, %s20
      %s23 = sphi 0, %s21
      %s35 = sphi 0, %s37
      %s38 = sphi 0, %s35
      %s39 = sphi 0, %s38
      %s55 = sphi 0, %s39
      %s63 = sphi 0, %s65
      %s66 = sphi 0, %s63
      %s67 = sphi 0, %s66
      %s83 = sphi 0, %s67
      %s91 = sphi 0, %s93
      %s94 = sphi 0, %s91
      %s95 = sphi 0, %s94
      %s111 = sphi 0, %s95
    $region4: #{tpu_custom_call.1} parent=1 // loop_header_branch
      %14 = sbr.rel (%p12) target = $region8
    $region5: #{tpu_custom_call.1} parent=1 // loop_body
      %s16 = ssub.s32 %s11, 1
      %s17 = ssub.s32 %s11, 2
      %s24 = sadd.s32 1, %s19
      %p25 = scmp.ge.s32.totalorder %s24, 1
      %s26 = scalar_select %p25, 0, %s24
      %s27 = sadd.s32 1, %s18
      %s28 = scalar_select %p25, %s27, %s18
      %p29 = scmp.ge.s32.totalorder %s28, 2
      %s30 = scalar_select %p29, 0, %s28
      %s31 = ssub.s32 %s18, %s30
      %s32 = ssub.s32 %s19, %s26
      %s33 = sor.u32 %s31, %s32
      %p34 = scmp.eq.s32.totalorder %s33, 0
      %s36 = sadd.s32 %s35, 1
      %s37 = scalar_select %p34, %s35, %s36
      %p40 = pneg %p34
      %p41 = scmp.eq.s32.totalorder %s11, 1
      %p42 = por %p40, %p41
      %p43 = scmp.ne.s32.totalorder %s35, %s38
      %p44 = scmp.eq.s32.totalorder %s11, 0
      %p45 = por %p43, %p44
      %p46 = scmp.ne.s32.totalorder %s35, %s38
      %p47 = scmp.eq.s32.totalorder %s16, 1
      %p48 = por %p46, %p47
      %p49 = scmp.ne.s32.totalorder %s38, %s39
      %p50 = scmp.eq.s32.totalorder %s16, 0
      %p51 = por %p49, %p50
      %p52 = scmp.ne.s32.totalorder %s38, %s39
      %p53 = scmp.eq.s32.totalorder %s17, 1
      %p54 = por %p52, %p53
      %p56 = scmp.ne.s32.totalorder %s39, %s55
      %p57 = scmp.eq.s32.totalorder %s17, 0
      %p58 = por %p56, %p57
      %s59 = ssub.s32 %s18, %s30
      %s60 = ssub.s32 %s19, %s26
      %s61 = sor.u32 %s59, %s60
      %p62 = scmp.eq.s32.totalorder %s61, 0
      %s64 = sadd.s32 %s63, 1
      %s65 = scalar_select %p62, %s63, %s64
      %p68 = pneg %p62
      %p69 = scmp.eq.s32.totalorder %s11, 1
      %p70 = por %p68, %p69
      %p71 = scmp.ne.s32.totalorder %s63, %s66
      %p72 = scmp.eq.s32.totalorder %s11, 0
      %p73 = por %p71, %p72
      %p74 = scmp.ne.s32.totalorder %s63, %s66
      %p75 = scmp.eq.s32.totalorder %s16, 1
      %p76 = por %p74, %p75
      %p77 = scmp.ne.s32.totalorder %s66, %s67
      %p78 = scmp.eq.s32.totalorder %s16, 0
      %p79 = por %p77, %p78
      %p80 = scmp.ne.s32.totalorder %s66, %s67
      %p81 = scmp.eq.s32.totalorder %s17, 1
      %p82 = por %p80, %p81
      %p84 = scmp.ne.s32.totalorder %s67, %s83
      %p85 = scmp.eq.s32.totalorder %s17, 0
      %p86 = por %p84, %p85
      %s87 = ssub.s32 %s18, %s30
      %s88 = ssub.s32 %s19, %s26
      %s89 = sor.u32 %s87, %s88
      %p90 = scmp.eq.s32.totalorder %s89, 0
      %s92 = sadd.s32 %s91, 1
      %s93 = scalar_select %p90, %s91, %s92
      %p96 = pneg %p90
      %p97 = scmp.eq.s32.totalorder %s11, 1
      %p98 = por %p96, %p97
      %p99 = scmp.ne.s32.totalorder %s91, %s94
      %p100 = scmp.eq.s32.totalorder %s11, 0
      %p101 = por %p99, %p100
      %p102 = scmp.ne.s32.totalorder %s91, %s94
      %p103 = scmp.eq.s32.totalorder %s16, 1
      %p104 = por %p102, %p103
      %p105 = scmp.ne.s32.totalorder %s94, %s95
      %p106 = scmp.eq.s32.totalorder %s16, 0
      %p107 = por %p105, %p106
      %p108 = scmp.ne.s32.totalorder %s94, %s95
      %p109 = scmp.eq.s32.totalorder %s17, 1
      %p110 = por %p108, %p109
      %p112 = scmp.ne.s32.totalorder %s95, %s111
      %p113 = scmp.eq.s32.totalorder %s17, 0
      %p114 = por %p112, %p113
      %p115 = scmp.le.s32.totalorder 1, %s11
      %p116 = scmp.lt.s32.totalorder %s11, 3
      %p117 = pnand %p115, %p116
      %p118 = pneg %p117
      // Predicated region
      $region9: #{tpu_custom_call.1} parent=5 // pred_check
        _
      $region10: #{tpu_custom_call.1} parent=5 // pred_check_branch
        %120 = sbr.rel (%p117) target = $region12
      $region11: #{tpu_custom_call.1} parent=5 // pred_region
        %s121 = ssub.s32 %s11, 1
      $region12: #{tpu_custom_call.1} parent=5 // pred_fallthru
        _
      %p122 = scmp.lt.s32.totalorder %s11, 2
      // Predicated region
      $region13: #{tpu_custom_call.1} parent=5 // pred_check
        %p123 = pneg %p122
      $region14: #{tpu_custom_call.1} parent=5 // pred_check_branch
        %125 = sbr.rel (%p123) target = $region16
      $region15: #{tpu_custom_call.1} parent=5 // pred_region
        // Predicated region
        $region17: #{tpu_custom_call.1} parent=15 // pred_check
          %p126 = pneg %p45
        $region18: #{tpu_custom_call.1} parent=15 // pred_check_branch
          %128 = sbr.rel (%p126) target = $region20
        $region19: #{tpu_custom_call.1} parent=15 // pred_region
          %s129 = smul.u32 2, %s19
          %p130 = scmp.lt.s32.totalorder %s18, 1
          %s131 = scalar_select %p130, %s18, 1
          %p132 = scmp.lt.s32.totalorder %s129, 1
          %s133 = scalar_select %p132, %s129, 1
          %s134 = smul.addr %s131, 6
          %s135 = sadd.s32 %s133, %s134
          %s136 = smul.addr %s135, 8
          %s137 = scalar_lea.vmem %s0, %s136
          %s138 = smul.u32 2, %s19
        $region20: #{tpu_custom_call.1} parent=15 // pred_fallthru
          _
        // Predicated region
        $region21: #{tpu_custom_call.1} parent=15 // pred_check
          %p139 = pneg %p73
        $region22: #{tpu_custom_call.1} parent=15 // pred_check_branch
          %141 = sbr.rel (%p139) target = $region24
        $region23: #{tpu_custom_call.1} parent=15 // pred_region
          %s142 = smul.u32 2, %s19
          %p143 = scmp.lt.s32.totalorder %s18, 1
          %s144 = scalar_select %p143, %s18, 1
          %p145 = scmp.lt.s32.totalorder %s142, 1
          %s146 = scalar_select %p145, %s142, 1
          %s147 = smul.addr %s144, 6
          %s148 = sadd.s32 %s146, %s147
          %s149 = smul.addr %s148, 8
          %s150 = scalar_lea.vmem %s1, %s149
          %s151 = smul.u32 2, %s19
        $region24: #{tpu_custom_call.1} parent=15 // pred_fallthru
          _
      $region16: #{tpu_custom_call.1} parent=5 // pred_fallthru
        _
      %p152 = scmp.le.s32.totalorder 1, %s11
      %p153 = scmp.lt.s32.totalorder %s11, 3
      %p154 = pnand %p152, %p153
      %p155 = pneg %p154
      // Predicated region
      $region25: #{tpu_custom_call.1} parent=5 // pred_check
        _
      $region26: #{tpu_custom_call.1} parent=5 // pred_check_branch
        %157 = sbr.rel (%p154) target = $region28
      $region27: #{tpu_custom_call.1} parent=5 // pred_region
        %s158 = ssub.s32 %s11, 1
        %s159 = smul.u32 2, %s21
        %p160 = scmp.lt.s32.totalorder %s20, 1
        %s161 = scalar_select %p160, %s20, 1
        %p162 = scmp.lt.s32.totalorder %s159, 1
        %s163 = scalar_select %p162, %s159, 1
        %s164 = smul.addr %s161, 6
        %s165 = sadd.s32 %s163, %s164
        %s166 = smul.addr %s165, 8
        %s167 = scalar_lea.vmem %s0, %s166
        %p168 = pneg %p51
        %p169 = pneg %p48
        %s170 = smul.u32 2, %s21
        %p171 = scmp.lt.s32.totalorder %s20, 1
        %s172 = scalar_select %p171, %s20, 1
        %p173 = scmp.lt.s32.totalorder %s170, 1
        %s174 = scalar_select %p173, %s170, 1
        %s175 = smul.addr %s172, 6
        %s176 = sadd.s32 %s174, %s175
        %s177 = smul.addr %s176, 8
        %s178 = scalar_lea.vmem %s1, %s177
        %p179 = pneg %p79
        %p180 = pneg %p76
        %p181 = pneg %p107
        %p182 = pneg %p104
        %s183 = sand.u32 %s94, 1
        %s184 = scalar_lea.sflag [#allocation3], %s183
        %s185 = sand.u32 %s94, 1
        %s186 = smul.addr %s185, 16
        %s187 = scalar_lea.vmem [#allocation2], %s186
        %s188 = smul.u32 2, %s21
        %p189 = scmp.lt.s32.totalorder %s20, 1
        %s190 = scalar_select %p189, %s20, 1
        %p191 = scmp.lt.s32.totalorder %s188, 1
        %s192 = scalar_select %p191, %s188, 1
        %s193 = smul.addr %s190, 6
        %s194 = sadd.s32 %s192, %s193
        %s195 = smul.addr %s194, 8
        %s196 = scalar_lea.vmem %s0, %s195
        %s197 = smul.u32 2, %s21
        %s198 = smul.u32 2, %s21
        %p199 = scmp.lt.s32.totalorder %s20, 1
        %s200 = scalar_select %p199, %s20, 1
        %p201 = scmp.lt.s32.totalorder %s198, 1
        %s202 = scalar_select %p201, %s198, 1
        %s203 = smul.addr %s200, 6
        %s204 = sadd.s32 %s202, %s203
        %s205 = smul.addr %s204, 8
        %s206 = scalar_lea.vmem %s1, %s205
        %s207 = smul.u32 2, %s21
        %v208 = vld [vmem:[%s196] sm:$0xff]
        %v209 = vld [vmem:[%s196 + $0x8] sm:$0xff]
        %v210 = vld [vmem:[%s196 + $0x10] sm:$0xff]
        %v211 = vld [vmem:[%s196 + $0x18] sm:$0xff]
        %v212 = vld [vmem:[%s196 + $0x20] sm:$0x7]
        %v213 = vld [vmem:[%s196 + $0x28] sm:$0x7]
        %v214 = vld [vmem:[%s206] sm:$0xff]
        %v215 = vld [vmem:[%s206 + $0x8] sm:$0xff]
        %v216 = vld [vmem:[%s206 + $0x10] sm:$0xff]
        %v217 = vld [vmem:[%s206 + $0x18] sm:$0xff]
        %v218 = vld [vmem:[%s206 + $0x20] sm:$0x7]
        %v219 = vld [vmem:[%s206 + $0x28] sm:$0x7]
        %vm220 = vcmask 1042432
        %v221 = vsel %vm220, %v212, -inf
        %v222 = vmax.f32 %v208, %v221
        %v223 = vmax.f32 %v222, %v210
        %v224 = vrot.slane %v223, 4
        %v225 = vmax.f32 %v223, %v224
        %v226 = vrot.slane %v225, 2
        %v227 = vmax.f32 %v225, %v226
        %v228 = vrot.slane %v227, 1
        %v229 = vmax.f32 %v227, %v228
        %v230 = vsel %vm220, %v213, -inf
        %v231 = vmax.f32 %v209, %v230
        %v232 = vmax.f32 %v231, %v211
        %v233 = vrot.slane %v232, 4
        %v234 = vmax.f32 %v232, %v233
        %v235 = vrot.slane %v234, 2
        %v236 = vmax.f32 %v234, %v235
        %v237 = vrot.slane %v236, 1
        %v238 = vmax.f32 %v236, %v237
        %v239 = vsel %vm220, %v218, -inf
        %v240 = vmax.f32 %v214, %v239
        %v241 = vmax.f32 %v240, %v216
        %v242 = vrot.slane %v241, 4
        %v243 = vmax.f32 %v241, %v242
        %v244 = vrot.slane %v243, 2
        %v245 = vmax.f32 %v243, %v244
        %v246 = vrot.slane %v245, 1
        %v247 = vmax.f32 %v245, %v246
        %v248 = vsel %vm220, %v219, -inf
        %v249 = vmax.f32 %v215, %v248
        %v250 = vmax.f32 %v249, %v217
        %v251 = vrot.slane %v250, 4
        %v252 = vmax.f32 %v250, %v251
        %v253 = vrot.slane %v252, 2
        %v254 = vmax.f32 %v252, %v253
        %v255 = vrot.slane %v254, 1
        %v256 = vmax.f32 %v254, %v255
        %v257 = vadd.f32 %v229, %v247
        %v258 = vadd.f32 %v238, %v256
        %v259 = vrcp.pop %v257
        %v260 = vmul.f32 1.0, %v259
        %v261 = vrcp.pop %v258
        %v262 = vmul.f32 1.0, %v261
        %v263 = vmul.f32 %v229, 8.0
        %v264 = vmul.f32 %v238, 8.0
        %v265 = vmul.f32 %v263, %v260
        %v266 = vmul.f32 %v264, %v262
        %v267 = vmul.f32 %v247, 8.0
        %v268 = vmul.f32 %v256, 8.0
        %v269 = vmul.f32 %v267, %v260
        %v270 = vmul.f32 %v268, %v262
        %v271 = vrcp.pop %v265
        %v272 = vmul.f32 1.0, %v271
        %v273 = vrcp.pop %v266
        %v274 = vmul.f32 1.0, %v273
        %v275 = vrcp.pop %v269
        %v276 = vmul.f32 1.0, %v275
        %v277 = vrcp.pop %v270
        %v278 = vmul.f32 1.0, %v277
        %v279 = vmul.f32 %v208, %v272
        %v280 = vmul.f32 %v209, %v274
        %v281 = vmul.f32 %v210, %v272
        %v282 = vmul.f32 %v211, %v274
        %v283 = vmul.f32 %v212, %v272
        %v284 = vmul.f32 %v213, %v274
        %v285 = vmul.f32 %v214, %v276
        %v286 = vmul.f32 %v215, %v278
        %v287 = vmul.f32 %v216, %v276
        %v288 = vmul.f32 %v217, %v278
        %v289 = vmul.f32 %v218, %v276
        %v290 = vmul.f32 %v219, %v278
        %v291 = vmul.f32 %v229, %v272
        %v292 = vmul.f32 %v238, %v274
        %v293 = vmul.f32 %v247, %v276
        %v294 = vmul.f32 %v256, %v278
        %v295 = vsub.f32 %v279, %v291
        %v296 = vsub.f32 %v280, %v292
        %v297 = vsub.f32 %v281, %v291
        %v298 = vsub.f32 %v282, %v292
        %v299 = vsub.f32 %v283, %v291
        %v300 = vsub.f32 %v284, %v292
        %v301 = vmul.f32 %v295, 1.442695
        %v302 = vpow.pop %v301
        %v303 = vmul.f32 %v296, 1.442695
        %v304 = vpow.pop %v303
        %v305 = vmul.f32 %v297, 1.442695
        %v306 = vpow.pop %v305
        %v307 = vmul.f32 %v298, 1.442695
        %v308 = vpow.pop %v307
        %v309 = vmul.f32 %v299, 1.442695
        %v310 = vpow.pop %v309
        %v311 = vmul.f32 %v300, 1.442695
        %v312 = vpow.pop %v311
        %v313 = vsub.f32 %v285, %v293
        %v314 = vsub.f32 %v286, %v294
        %v315 = vsub.f32 %v287, %v293
        %v316 = vsub.f32 %v288, %v294
        %v317 = vsub.f32 %v289, %v293
        %v318 = vsub.f32 %v290, %v294
        %v319 = vmul.f32 %v313, 1.442695
        %v320 = vpow.pop %v319
        %v321 = vmul.f32 %v314, 1.442695
        %v322 = vpow.pop %v321
        %v323 = vmul.f32 %v315, 1.442695
        %v324 = vpow.pop %v323
        %v325 = vmul.f32 %v316, 1.442695
        %v326 = vpow.pop %v325
        %v327 = vmul.f32 %v317, 1.442695
        %v328 = vpow.pop %v327
        %v329 = vmul.f32 %v318, 1.442695
        %v330 = vpow.pop %v329
        %v331 = vadd.f32 %v302, %v306
        %v332 = vsel %vm220, %v310, 0.0
        %v333 = vadd.f32 %v331, %v332
        %v334 = vrot.slane %v333, 4
        %v335 = vadd.f32 %v333, %v334
        %v336 = vrot.slane %v335, 2
        %v337 = vadd.f32 %v335, %v336
        %v338 = vrot.slane %v337, 1
        %v339 = vadd.f32 %v337, %v338
        %v340 = vadd.f32 %v304, %v308
        %v341 = vsel %vm220, %v312, 0.0
        %v342 = vadd.f32 %v340, %v341
        %v343 = vrot.slane %v342, 4
        %v344 = vadd.f32 %v342, %v343
        %v345 = vrot.slane %v344, 2
        %v346 = vadd.f32 %v344, %v345
        %v347 = vrot.slane %v346, 1
        %v348 = vadd.f32 %v346, %v347
        %v349 = vadd.f32 %v320, %v324
        %v350 = vsel %vm220, %v328, 0.0
        %v351 = vadd.f32 %v349, %v350
        %v352 = vrot.slane %v351, 4
        %v353 = vadd.f32 %v351, %v352
        %v354 = vrot.slane %v353, 2
        %v355 = vadd.f32 %v353, %v354
        %v356 = vrot.slane %v355, 1
        %v357 = vadd.f32 %v355, %v356
        %v358 = vadd.f32 %v322, %v326
        %v359 = vsel %vm220, %v330, 0.0
        %v360 = vadd.f32 %v358, %v359
        %v361 = vrot.slane %v360, 4
        %v362 = vadd.f32 %v360, %v361
        %v363 = vrot.slane %v362, 2
        %v364 = vadd.f32 %v362, %v363
        %v365 = vrot.slane %v364, 1
        %v366 = vadd.f32 %v364, %v365
        %v367 = vlog2.pop %v339
        %v368 = vmul.f32 %v367, 0.6931472
        %v369 = vlog2.pop %v348
        %v370 = vmul.f32 %v369, 0.6931472
        %v371 = vsub.f32 %v295, %v368
        %v372 = vsub.f32 %v296, %v370
        %v373 = vsub.f32 %v297, %v368
        %v374 = vsub.f32 %v298, %v370
        %v375 = vsub.f32 %v299, %v368
        %v376 = vsub.f32 %v300, %v370
        %v377 = vlog2.pop %v357
        %v378 = vmul.f32 %v377, 0.6931472
        %v379 = vlog2.pop %v366
        %v380 = vmul.f32 %v379, 0.6931472
        %v381 = vsub.f32 %v313, %v378
        %v382 = vsub.f32 %v314, %v380
        %v383 = vsub.f32 %v315, %v378
        %v384 = vsub.f32 %v316, %v380
        %v385 = vsub.f32 %v317, %v378
        %v386 = vsub.f32 %v318, %v380
        %v387 = vrcp.pop %v357
        %v388 = vmul.f32 1.0, %v387
        %v389 = vrcp.pop %v366
        %v390 = vmul.f32 1.0, %v389
        %v391 = vmul.f32 %v320, %v388
        %v392 = vmul.f32 %v322, %v390
        %v393 = vmul.f32 %v324, %v388
        %v394 = vmul.f32 %v326, %v390
        %v395 = vmul.f32 %v328, %v388
        %v396 = vmul.f32 %v330, %v390
        %v397 = vsub.f32 %v381, %v371
        %v398 = vsub.f32 %v382, %v372
        %v399 = vsub.f32 %v383, %v373
        %v400 = vsub.f32 %v384, %v374
        %v401 = vsub.f32 %v385, %v375
        %v402 = vsub.f32 %v386, %v376
        %v403 = vmul.f32 %v391, %v397
        %v404 = vmul.f32 %v392, %v398
        %v405 = vmul.f32 %v393, %v399
        %v406 = vmul.f32 %v394, %v400
        %v407 = vmul.f32 %v395, %v401
        %v408 = vmul.f32 %v396, %v402
        %v409 = vadd.f32 %v403, %v405
        %v410 = vsel %vm220, %v407, 0.0
        %v411 = vadd.f32 %v409, %v410
        %v412 = vrot.slane %v411, 4
        %v413 = vadd.f32 %v411, %v412
        %v414 = vrot.slane %v413, 2
        %v415 = vadd.f32 %v413, %v414
        %v416 = vrot.slane %v415, 1
        %v417 = vadd.f32 %v415, %v416
        %v418 = vadd.f32 %v404, %v406
        %v419 = vsel %vm220, %v408, 0.0
        %v420 = vadd.f32 %v418, %v419
        %v421 = vrot.slane %v420, 4
        %v422 = vadd.f32 %v420, %v421
        %v423 = vrot.slane %v422, 2
        %v424 = vadd.f32 %v422, %v423
        %v425 = vrot.slane %v424, 1
        %v426 = vadd.f32 %v424, %v425
        %v427 = vmul.f32 %v269, %v265
        %v428 = vmul.f32 %v270, %v266
        %v429 = vmul.f32 %v417, %v427
        %v430 = vmul.f32 %v426, %v428
        %v431 = vmul.f32 %v208, 0.25
        %v432 = vmul.f32 %v209, 0.25
        %v433 = vmul.f32 %v210, 0.25
        %v434 = vmul.f32 %v211, 0.25
        %v435 = vmul.f32 %v212, 0.25
        %v436 = vmul.f32 %v213, 0.25
        %v437 = vmul.f32 %v214, 0.25
        %v438 = vmul.f32 %v215, 0.25
        %v439 = vmul.f32 %v216, 0.25
        %v440 = vmul.f32 %v217, 0.25
        %v441 = vmul.f32 %v218, 0.25
        %v442 = vmul.f32 %v219, 0.25
        %v443 = vmul.f32 %v229, 0.25
        %v444 = vmul.f32 %v238, 0.25
        %v445 = vmul.f32 %v247, 0.25
        %v446 = vmul.f32 %v256, 0.25
        %v447 = vsub.f32 %v431, %v443
        %v448 = vsub.f32 %v432, %v444
        %v449 = vsub.f32 %v433, %v443
        %v450 = vsub.f32 %v434, %v444
        %v451 = vsub.f32 %v435, %v443
        %v452 = vsub.f32 %v436, %v444
        %v453 = vmul.f32 %v447, 1.442695
        %v454 = vpow.pop %v453
        %v455 = vmul.f32 %v448, 1.442695
        %v456 = vpow.pop %v455
        %v457 = vmul.f32 %v449, 1.442695
        %v458 = vpow.pop %v457
        %v459 = vmul.f32 %v450, 1.442695
        %v460 = vpow.pop %v459
        %v461 = vmul.f32 %v451, 1.442695
        %v462 = vpow.pop %v461
        %v463 = vmul.f32 %v452, 1.442695
        %v464 = vpow.pop %v463
        %v465 = vsub.f32 %v437, %v445
        %v466 = vsub.f32 %v438, %v446
        %v467 = vsub.f32 %v439, %v445
        %v468 = vsub.f32 %v440, %v446
        %v469 = vsub.f32 %v441, %v445
        %v470 = vsub.f32 %v442, %v446
        %v471 = vmul.f32 %v465, 1.442695
        %v472 = vpow.pop %v471
        %v473 = vmul.f32 %v466, 1.442695
        %v474 = vpow.pop %v473
        %v475 = vmul.f32 %v467, 1.442695
        %v476 = vpow.pop %v475
        %v477 = vmul.f32 %v468, 1.442695
        %v478 = vpow.pop %v477
        %v479 = vmul.f32 %v469, 1.442695
        %v480 = vpow.pop %v479
        %v481 = vmul.f32 %v470, 1.442695
        %v482 = vpow.pop %v481
        %v483 = vadd.f32 %v454, %v458
        %v484 = vsel %vm220, %v462, 0.0
        %v485 = vadd.f32 %v483, %v484
        %v486 = vrot.slane %v485, 4
        %v487 = vadd.f32 %v485, %v486
        %v488 = vrot.slane %v487, 2
        %v489 = vadd.f32 %v487, %v488
        %v490 = vrot.slane %v489, 1
        %v491 = vadd.f32 %v489, %v490
        %v492 = vadd.f32 %v456, %v460
        %v493 = vsel %vm220, %v464, 0.0
        %v494 = vadd.f32 %v492, %v493
        %v495 = vrot.slane %v494, 4
        %v496 = vadd.f32 %v494, %v495
        %v497 = vrot.slane %v496, 2
        %v498 = vadd.f32 %v496, %v497
        %v499 = vrot.slane %v498, 1
        %v500 = vadd.f32 %v498, %v499
        %v501 = vadd.f32 %v472, %v476
        %v502 = vsel %vm220, %v480, 0.0
        %v503 = vadd.f32 %v501, %v502
        %v504 = vrot.slane %v503, 4
        %v505 = vadd.f32 %v503, %v504
        %v506 = vrot.slane %v505, 2
        %v507 = vadd.f32 %v505, %v506
        %v508 = vrot.slane %v507, 1
        %v509 = vadd.f32 %v507, %v508
        %v510 = vadd.f32 %v474, %v478
        %v511 = vsel %vm220, %v482, 0.0
        %v512 = vadd.f32 %v510, %v511
        %v513 = vrot.slane %v512, 4
        %v514 = vadd.f32 %v512, %v513
        %v515 = vrot.slane %v514, 2
        %v516 = vadd.f32 %v514, %v515
        %v517 = vrot.slane %v516, 1
        %v518 = vadd.f32 %v516, %v517
        %v519 = vlog2.pop %v491
        %v520 = vmul.f32 %v519, 0.6931472
        %v521 = vlog2.pop %v500
        %v522 = vmul.f32 %v521, 0.6931472
        %v523 = vsub.f32 %v447, %v520
        %v524 = vsub.f32 %v448, %v522
        %v525 = vsub.f32 %v449, %v520
        %v526 = vsub.f32 %v450, %v522
        %v527 = vsub.f32 %v451, %v520
        %v528 = vsub.f32 %v452, %v522
        %v529 = vlog2.pop %v509
        %v530 = vmul.f32 %v529, 0.6931472
        %v531 = vlog2.pop %v518
        %v532 = vmul.f32 %v531, 0.6931472
        %v533 = vsub.f32 %v465, %v530
        %v534 = vsub.f32 %v466, %v532
        %v535 = vsub.f32 %v467, %v530
        %v536 = vsub.f32 %v468, %v532
        %v537 = vsub.f32 %v469, %v530
        %v538 = vsub.f32 %v470, %v532
        %v539 = vrcp.pop %v509
        %v540 = vmul.f32 1.0, %v539
        %v541 = vrcp.pop %v518
        %v542 = vmul.f32 1.0, %v541
        %v543 = vmul.f32 %v472, %v540
        %v544 = vmul.f32 %v474, %v542
        %v545 = vmul.f32 %v476, %v540
        %v546 = vmul.f32 %v478, %v542
        %v547 = vmul.f32 %v480, %v540
        %v548 = vmul.f32 %v482, %v542
        %v549 = vsub.f32 %v533, %v523
        %v550 = vsub.f32 %v534, %v524
        %v551 = vsub.f32 %v535, %v525
        %v552 = vsub.f32 %v536, %v526
        %v553 = vsub.f32 %v537, %v527
        %v554 = vsub.f32 %v538, %v528
        %v555 = vmul.f32 %v543, %v549
        %v556 = vmul.f32 %v544, %v550
        %v557 = vmul.f32 %v545, %v551
        %v558 = vmul.f32 %v546, %v552
        %v559 = vmul.f32 %v547, %v553
        %v560 = vmul.f32 %v548, %v554
        %v561 = vadd.f32 %v555, %v557
        %v562 = vsel %vm220, %v559, 0.0
        %v563 = vadd.f32 %v561, %v562
        %v564 = vrot.slane %v563, 4
        %v565 = vadd.f32 %v563, %v564
        %v566 = vrot.slane %v565, 2
        %v567 = vadd.f32 %v565, %v566
        %v568 = vrot.slane %v567, 1
        %v569 = vadd.f32 %v567, %v568
        %v570 = vadd.f32 %v556, %v558
        %v571 = vsel %vm220, %v560, 0.0
        %v572 = vadd.f32 %v570, %v571
        %v573 = vrot.slane %v572, 4
        %v574 = vadd.f32 %v572, %v573
        %v575 = vrot.slane %v574, 2
        %v576 = vadd.f32 %v574, %v575
        %v577 = vrot.slane %v576, 1
        %v578 = vadd.f32 %v576, %v577
        %v579 = vmul.f32 %v569, 16.0
        %v580 = vmul.f32 %v578, 16.0
        %vm581 = vcmask 1040384
        %v582 = vsel %vm581, %v429, 0.0
        %v583 = vsel %vm581, %v430, 0.0
        %v584 = vadd.f32 %v582, %v583
        %585 = vadd.xlane.f32.xlu0 %v584
        %v586 = vpop.xlane.xlu0 %585
        %v587 = vrot.slane %v586, 4
        %v588 = vadd.f32 %v586, %v587
        %v589 = vrot.slane %v588, 2
        %v590 = vadd.f32 %v588, %v589
        %v591 = vrot.slane %v590, 1
        %v592 = vadd.f32 %v590, %v591
        %s593 = vtos %v592
        %v594 = vsel %vm581, %v579, 0.0
        %v595 = vsel %vm581, %v580, 0.0
        %v596 = vadd.f32 %v594, %v595
        %597 = vadd.xlane.f32.xlu0 %v596
        %v598 = vpop.xlane.xlu0 %597
        %v599 = vrot.slane %v598, 4
        %v600 = vadd.f32 %v598, %v599
        %v601 = vrot.slane %v600, 2
        %v602 = vadd.f32 %v600, %v601
        %v603 = vrot.slane %v602, 1
        %v604 = vadd.f32 %v602, %v603
        %s605 = vtos %v604
        %v606 = vlaneseq
        %v607 = vand.u32 %v606, 127
        %v608 = vadd.s32 %v607, 128
        %v609 = vlaneseq
        %v610 = vshrl.u32 %v609, 7
        %vm611 = vcmp.eq.s32.totalorder %v610, 0
        %vm612 = vcmp.eq.s32.totalorder %v607, 0
        %vm613 = vcmp.eq.s32.totalorder %v608, 0
        %vm614 = vmand %vm611, %vm612
        %vm615 = vmand %vm611, %vm613
        %vm616 = vcmp.eq.s32.totalorder %v607, 128
        %vm617 = vcmp.eq.s32.totalorder %v608, 128
        %vm618 = vmand %vm611, %vm616
        %vm619 = vmand %vm611, %vm617
        %v620 = vstv %s605
        %v621 = vsel %vm618, %v620, 0.0
        %v622 = vsel %vm619, %v620, 0.0
        %v623 = vstv %s593
        %v624 = vsel %vm614, %v623, %v621
        %v625 = vsel %vm615, %v623, %v622
        %626 = vst [vmem:[%s187] sm:$0xff] %v624
        %627 = vst [vmem:[%s187 + $0x8] sm:$0xff] %v625
        %s628 = sand.u32 %s94, 1
        %s629 = scalar_lea.sflag [#allocation3], %s628
        %s630 = sand.u32 %s94, 1
        %s631 = smul.addr %s630, 16
        %s632 = scalar_lea.vmem [#allocation2], %s631
        // Predicated region
        $region29: #{tpu_custom_call.1} parent=27 // pred_check
          %p633 = pneg %p104
        $region30: #{tpu_custom_call.1} parent=27 // pred_check_branch
          %635 = sbr.rel (%p633) target = $region32
        $region31: #{tpu_custom_call.1} parent=27 // pred_region
          %s637 = ssub.s32 256, 256
          %638 = vsyncadd %s629, %s637
          %s639 = smul.addr %s21, 2
          %s640 = smul.addr %s20, 2
          %s641 = sadd.s32 %s639, %s640
          %s642 = smul.addr %s641, 128
          %s643 = scalar_lea.hbm %s2, %s642
          %s645 = sshll.u32 %s632, 4
          %s646 = int_to_ptr.vmem [resolvable:$true] %s645
          %648 = dma.vmem_to_hbm [thread:$0]  %s646, 256, %s643, %s629
        $region32: #{tpu_custom_call.1} parent=27 // pred_fallthru
          _
      $region28: #{tpu_custom_call.1} parent=5 // pred_fallthru
        _
      %p649 = scmp.le.s32.totalorder 2, %s11
      // Predicated region
      $region33: #{tpu_custom_call.1} parent=5 // pred_check
        %p650 = pneg %p649
      $region34: #{tpu_custom_call.1} parent=5 // pred_check_branch
        %652 = sbr.rel (%p650) target = $region36
      $region35: #{tpu_custom_call.1} parent=5 // pred_region
        %s653 = ssub.s32 %s11, 2
        // Predicated region
        $region37: #{tpu_custom_call.1} parent=35 // pred_check
          %p654 = pneg %p110
        $region38: #{tpu_custom_call.1} parent=35 // pred_check_branch
          %656 = sbr.rel (%p654) target = $region40
        $region39: #{tpu_custom_call.1} parent=35 // pred_region
          %s657 = sand.u32 %s95, 1
          %s658 = scalar_lea.sflag [#allocation3], %s657
          %s659 = sand.u32 %s95, 1
          %s660 = smul.addr %s659, 16
          %s661 = scalar_lea.vmem [#allocation2], %s660
          %662 = dma.done %s658, 256
        $region40: #{tpu_custom_call.1} parent=35 // pred_fallthru
          _
      $region36: #{tpu_custom_call.1} parent=5 // pred_fallthru
        _
    $region6: #{tpu_custom_call.1} parent=1 // loop_footer
      %s15 = sadd.s32 1, %s11
    $region7: #{tpu_custom_call.1} parent=1 // loop_footer_branch
      %10 = sbr.rel target = $region3
    $region8: #{tpu_custom_call.1} parent=1 // loop_exit
      _
    %663 = vsyncpa [#allocation3], 1
    %s664 = scalar_lea.sflag [#allocation3], 1
    %665 = vsyncpa %s664, 1

</llo_original>
